<compile_context>
chip_gen: v5e
topology: v5e:2x2
jax: 0.10.0
libtpu: 0.0.40
codegen_flags: <defaults>
</compile_context>

<pallas_src>
import functools

import jax
import jax.numpy as jnp
from jax import lax
from jax.experimental import pallas as pl
from jax.experimental.pallas import tpu as pltpu


def _round_up(x, m):
    return ((x + m - 1) // m) * m


def _rnn_tagger_kernel(x_ref, wih_ref, whh_ref, bias_ref, wtag_ref, btag_ref,
                       out_ref, h_ref, work_ref, *, chunk_s, bt, matmul_dtype):
    """One (batch-tile, sequence-chunk) grid step.

    x_ref    : (chunk_s*bt, E)  seq-major embeddings for this chunk (matmul dtype)
    wih_ref  : (E, H)           W_ih^T
    whh_ref  : (H, H)           W_hh^T
    bias_ref : (1, H)           b_ih + b_hh (pre-folded, f32)
    wtag_ref : (H, Tp)          W_tag^T, tag dim padded to a multiple of 128
    btag_ref : (1, Tp)          b_tag (padded, f32)
    out_ref  : (chunk_s*bt, Tp) tag logits for this chunk (f32, lane-dense)
    h_ref    : (bt, H)  scratch hidden state carried across sequence chunks
    work_ref : (chunk_s*bt, H)  scratch: per-chunk pre-activations
    """
    c = pl.program_id(1)                 # sequence-chunk index ('arbitrary' axis)
    H = whh_ref.shape[0]

    @pl.when(c == 0)                     # h_{-1} = 0 at the start of each batch tile
    def _():
        h_ref[...] = jnp.zeros_like(h_ref)

    # Batched input projection for the whole chunk: one big-M MXU call, off the
    # serial critical path.  Elementwise math stays f32 (v5e VPU has no bf16).
    work_ref[...] = (
        jnp.dot(x_ref[...], wih_ref[...], preferred_element_type=jnp.float32)
        + bias_ref[...])

    whh = whh_ref[...]                   # hoisted: loaded once, reused every step
    wtag = wtag_ref[...]
    btag = btag_ref[...]

    # Serial recurrence: only h @ W_hh^T + tanh is on the dependent chain; the
    # per-step tag projection is independent MXU filler that hides its own cost.
    def step(t, h):
        row = pl.multiple_of(t * bt, 8)                    # bt is a multiple of 8
        pre_t = work_ref[pl.ds(row, bt), :]                # (bt, H) f32
        h_new = jnp.tanh(pre_t + jnp.dot(h.astype(matmul_dtype), whh,
                                         preferred_element_type=jnp.float32))
        logits_t = (jnp.dot(h_new.astype(matmul_dtype), wtag,
                            preferred_element_type=jnp.float32) + btag)
        out_ref[pl.ds(row, bt), :] = logits_t.astype(out_ref.dtype)
        return h_new

    # Full unroll only while live f32 hidden tiles stay well inside the 64-vreg
    # file; otherwise a bounded unroll to avoid spills.
    h_vregs = max(1, (bt * H * 4) // 4096)
    unroll = True if chunk_s * (h_vregs + 1) <= 48 else 4
    h_ref[...] = lax.fori_loop(0, chunk_s, step, h_ref[...], unroll=unroll)


def _auto_seq_chunk(seq_len, bt, E, H, Tp, mm_bytes, budget_bytes=40 << 20):
    """Largest sequence chunk whose pipeline footprint fits ~budget (sized for
    v7x's 64 MiB/TC; v5e/v6e have 128 MiB so this is conservative there)."""
    fixed = 2 * ((E * H + H * H + H * Tp) * mm_bytes + (H + Tp) * 4) + bt * H * 4
    per_step = bt * (2 * E * mm_bytes + 2 * Tp * 4 + H * 4)
    chunk = max(1, (budget_bytes - fixed) // max(per_step, 1))
    return int(min(chunk, seq_len))


def rnn_tagger_logits(x_flat, w_ih, w_hh, b_ih, b_hh, w_tag, b_tag, *,
                      n_btiles, bt, n_chunks, seq_chunk,
                      matmul_dtype=jnp.bfloat16):
    """x_flat: [n_btiles * n_chunks * seq_chunk * bt, E] embeddings, ordered
    (batch-tile, timestep, batch-row) so each (tile, chunk) block is contiguous.
    Weights in PyTorch shapes: w_ih [H,E], w_hh [H,H], b_ih/b_hh [H],
    w_tag [T,H], b_tag [T].  Returns flattened logits [rows, Tp] f32."""
    total, E = x_flat.shape
    H = w_hh.shape[0]
    T = w_tag.shape[0]
    Tp = _round_up(max(T, 128), 128)          # lane-dense, unmasked output stores
    mm_bytes = jnp.dtype(matmul_dtype).itemsize

    wih_t = jnp.transpose(w_ih).astype(matmul_dtype)                  # [E, H]
    whh_t = jnp.transpose(w_hh).astype(matmul_dtype)                  # [H, H]
    bias_comb = (b_ih + b_hh).reshape(1, H).astype(jnp.float32)       # folded bias
    wtag_t = jnp.transpose(
        jnp.pad(w_tag, ((0, Tp - T), (0, 0)))).astype(matmul_dtype)   # [H, Tp]
    btag = jnp.pad(b_tag, (0, Tp - T)).reshape(1, Tp).astype(jnp.float32)

    # Scoped-VMEM limit from the actual footprint: double-buffered x/out blocks,
    # chunk work scratch, carried h, weights (x2 safety); capped at 64 MiB (v7x).
    footprint = (2 * seq_chunk * bt * E * mm_bytes
                 + 2 * seq_chunk * bt * Tp * 4
                 + seq_chunk * bt * H * 4
                 + bt * H * 4
                 + 2 * ((E * H + H * H + H * Tp) * mm_bytes + (H + Tp) * 4))
    vmem_limit = int(min(64 << 20, max(2 * footprint, 16 << 20)))

    grid_spec = pltpu.PrefetchScalarGridSpec(
        num_scalar_prefetch=0,
        grid=(n_btiles, n_chunks),            # (parallel batch tiles, serial chunks)
        in_specs=[
            pl.BlockSpec((seq_chunk * bt, E), lambda b, c: (b * n_chunks + c, 0)),
            pl.BlockSpec((E, H), lambda b, c: (0, 0)),
            pl.BlockSpec((H, H), lambda b, c: (0, 0)),
            pl.BlockSpec((1, H), lambda b, c: (0, 0)),
            pl.BlockSpec((H, Tp), lambda b, c: (0, 0)),
            pl.BlockSpec((1, Tp), lambda b, c: (0, 0)),
        ],
        out_specs=pl.BlockSpec((seq_chunk * bt, Tp),
                               lambda b, c: (b * n_chunks + c, 0)),
        scratch_shapes=[
            pltpu.VMEM((bt, H), jnp.float32),              # hidden-state carry
            pltpu.VMEM((seq_chunk * bt, H), jnp.float32),  # chunk pre-activations
        ],
    )
    return pl.pallas_call(
        functools.partial(_rnn_tagger_kernel, chunk_s=seq_chunk, bt=bt,
                          matmul_dtype=matmul_dtype),
        out_shape=jax.ShapeDtypeStruct((total, Tp), jnp.float32),
        grid_spec=grid_spec,
        compiler_params=pltpu.CompilerParams(
            dimension_semantics=("parallel", "arbitrary"),
            vmem_limit_bytes=vmem_limit),
    )(x_flat, wih_t, whh_t, bias_comb, wtag_t, btag)


@functools.partial(jax.jit, static_argnames=("matmul_dtype", "seq_chunk"))
def rnn_cell_tagger_forward(tokens, embedding_table, w_ih, w_hh, b_ih, b_hh,
                            w_tag, b_tag, matmul_dtype=jnp.bfloat16,
                            seq_chunk=None):
    """Full forward (inference): returns dict with 'logits' and 'preds'."""
    B, S = tokens.shape
    E = embedding_table.shape[1]
    H = w_hh.shape[0]
    T = w_tag.shape[0]
    Tp = _round_up(max(T, 128), 128)
    mm_bytes = jnp.dtype(matmul_dtype).itemsize

    # Batch padding / tiling: only split the 'parallel' batch axis (v7x megacore)
    # if each TensorCore still gets >= 64 padded rows; tiny batches stay whole.
    if B >= 128:
        B_pad = _round_up(B, 16)
        n_btiles, bt = 2, B_pad // 2
    else:
        B_pad = _round_up(B, 8)
        n_btiles, bt = 1, B_pad

    if seq_chunk is None:
        seq_chunk = _auto_seq_chunk(S, bt, E, H, Tp, mm_bytes)
    S_pad = _round_up(S, seq_chunk)
    n_chunks = S_pad // seq_chunk

    # Gather embeddings directly in blocked order (batch-tile, timestep, row):
    # only the tiny int32 token matrix is transposed/padded; the big activation
    # tensor is produced once, already in kernel layout (pad token id 0 -> zero
    # row; padded rows/steps are discarded after the kernel).
    tokens_pad = jnp.pad(tokens, ((0, B_pad - B), (0, S_pad - S)))
    tok_blocked = jnp.transpose(tokens_pad.reshape(n_btiles, bt, S_pad),
                                (0, 2, 1))                       # (tiles, S_pad, bt)
    x_flat = jnp.take(embedding_table, tok_blocked.reshape(-1),
                      axis=0).astype(matmul_dtype)               # (rows, E)

    logits_flat = rnn_tagger_logits(x_flat, w_ih, w_hh, b_ih, b_hh, w_tag, b_tag,
                                    n_btiles=n_btiles, bt=bt, n_chunks=n_chunks,
                                    seq_chunk=seq_chunk, matmul_dtype=matmul_dtype)

    # Un-block the (tiny after the [:T] slice) logits back to [B, S, T].
    logits = logits_flat.reshape(n_btiles, S_pad, bt, Tp)[..., :T]
    logits = jnp.transpose(logits, (0, 2, 1, 3)).reshape(B_pad, S_pad, T)
    tag_logits = logits[:B, :S, :]

    mask = tokens != 0                                   # padding token id == 0
    # argmax(softmax(x)) == argmax(x): softmax dropped, identical predictions.
    pred_tags = jnp.argmax(tag_logits, axis=-1)
    preds = pred_tags * mask.astype(pred_tags.dtype)
    # TODO(synk): training branch (loss / accuracy bookkeeping) not implemented;
    # this is the tags=None inference path.
    return {"logits": tag_logits, "preds": preds}


def _reference_forward(tokens, embedding_table, w_ih, w_hh, b_ih, b_hh,
                       w_tag, b_tag):
    """Pure-JAX reference (lax.scan) for correctness checking."""
    embeds = jnp.take(embedding_table, tokens, axis=0)    # [B, S, E]
    B, S, E = embeds.shape
    H = w_hh.shape[0]

    def step(h, x_t):
        h_new = jnp.tanh(x_t @ w_ih.T + b_ih + h @ w_hh.T + b_hh)
        return h_new, h_new

    _, hs = jax.lax.scan(step, jnp.zeros((B, H), jnp.float32),
                         jnp.transpose(embeds, (1, 0, 2)))
    states = jnp.transpose(hs, (1, 0, 2))                 # [B, S, H]
    logits = states @ w_tag.T + b_tag
    mask = (tokens != 0)
    preds = jnp.argmax(jax.nn.softmax(logits, -1), -1) * mask.astype(jnp.int32)
    return logits, preds


if __name__ == "__main__":
    # Small, module-consistent shapes.
    B, S = 2, 8              # batch, sequence length
    E, H = 16, 32            # embedding_dim, hidden_dim
    V, T = 16, 8             # len(token_vocab), len(tag_vocab); pad token id = 0

    key = jax.random.PRNGKey(0)
    k_emb, k_wih, k_whh, k_bih, k_bhh, k_wtag, k_btag, k_tok = jax.random.split(key, 8)

    bound = 1.0 / jnp.sqrt(H)
    embedding_table = jax.random.normal(k_emb, (V, E), jnp.float32)
    embedding_table = embedding_table.at[0].set(0.0)      # padding_idx row is zero
    w_ih = jax.random.uniform(k_wih, (H, E), jnp.float32, -bound, bound)
    w_hh = jax.random.uniform(k_whh, (H, H), jnp.float32, -bound, bound)
    b_ih = jax.random.uniform(k_bih, (H,), jnp.float32, -bound, bound)
    b_hh = jax.random.uniform(k_bhh, (H,), jnp.float32, -bound, bound)
    w_tag = jax.random.uniform(k_wtag, (T, H), jnp.float32, -bound, bound)
    b_tag = jax.random.uniform(k_btag, (T,), jnp.float32, -bound, bound)

    tokens = jax.random.randint(k_tok, (B, S), 0, V, dtype=jnp.int32)
    tokens = tokens.at[:, -2:].set(0)                     # some padding positions

    ref_logits, ref_preds = _reference_forward(
        tokens, embedding_table, w_ih, w_hh, b_ih, b_hh, w_tag, b_tag)

    # f32 path with seq_chunk=4 -> two sequence chunks: exercises the hidden-
    # state carry across grid steps. Tight tolerance vs the lax.scan reference.
    out_f32 = rnn_cell_tagger_forward(tokens, embedding_table, w_ih, w_hh, b_ih,
                                      b_hh, w_tag, b_tag,
                                      matmul_dtype=jnp.float32, seq_chunk=4)
    jax.block_until_ready(out_f32)
    assert jnp.allclose(out_f32["logits"], ref_logits, atol=1e-5, rtol=1e-5)
    assert jnp.array_equal(out_f32["preds"], ref_preds)

    # Default fast path: bf16 MXU inputs (f32 accumulation) + auto chunk size.
    # Looser tolerance is an expected numerics change of the bf16 path.
    out_bf16 = rnn_cell_tagger_forward(tokens, embedding_table, w_ih, w_hh, b_ih,
                                       b_hh, w_tag, b_tag)
    jax.block_until_ready(out_bf16)
    assert jnp.allclose(out_bf16["logits"], ref_logits, atol=5e-2, rtol=5e-2)

    print("KERNEL_OK")
</pallas_src>

<mosaic_0001>
module attributes {stable_mosaic.version = 11 : i64} {
  func.func @_rnn_tagger_kernel(%arg0: i32, %arg1: i32, %arg2: memref<32x16xf32, #tpu.memory_space<vmem>>, %arg3: memref<16x32xf32, #tpu.memory_space<vmem>>, %arg4: memref<32x32xf32, #tpu.memory_space<vmem>>, %arg5: memref<1x32xf32, #tpu.memory_space<vmem>>, %arg6: memref<32x128xf32, #tpu.memory_space<vmem>>, %arg7: memref<1x128xf32, #tpu.memory_space<vmem>>, %arg8: memref<32x128xf32, #tpu.memory_space<vmem>>, %arg9: memref<8x32xf32, #tpu.memory_space<vmem>>, %arg10: memref<32x32xf32, #tpu.memory_space<vmem>>) attributes {dimension_semantics = [#tpu.dimension_semantics<parallel>, #tpu.dimension_semantics<arbitrary>], iteration_bounds = array<i64: 1, 2>, scalar_prefetch = 0 : i64, scratch_operands = 2 : i64, tpu.core_type = #tpu.core_type<tc>, window_params = [{transform_indices = @transform_0, window_bounds = array<i64: 32, 16>}, {pipeline_mode = #tpu.pipeline_mode<synchronous>, transform_indices = @transform_1, window_bounds = array<i64: 16, 32>}, {pipeline_mode = #tpu.pipeline_mode<synchronous>, transform_indices = @transform_2, window_bounds = array<i64: 32, 32>}, {pipeline_mode = #tpu.pipeline_mode<synchronous>, transform_indices = @transform_3, window_bounds = array<i64: 1, 32>}, {pipeline_mode = #tpu.pipeline_mode<synchronous>, transform_indices = @transform_4, window_bounds = array<i64: 32, 128>}, {pipeline_mode = #tpu.pipeline_mode<synchronous>, transform_indices = @transform_5, window_bounds = array<i64: 1, 128>}, {transform_indices = @transform_6, window_bounds = array<i64: 32, 128>}]} {
    %c0_i32 = arith.constant 0 : i32
    %0 = arith.cmpi eq, %arg1, %c0_i32 : i32
    %1 = arith.extui %0 : i1 to i32
    %c0_i32_0 = arith.constant 0 : i32
    %2 = arith.cmpi ne, %1, %c0_i32_0 : i32
    scf.if %2 {
      %cst_38 = arith.constant 0.000000e+00 : f32
      %63 = vector.broadcast %cst_38 : f32 to vector<8x32xf32>
      %c0_39 = arith.constant 0 : index
      %c0_40 = arith.constant 0 : index
      %64 = vector.load %arg9[%c0_39, %c0_40] : memref<8x32xf32, #tpu.memory_space<vmem>>, vector<8x32xf32>
      tpu.vector_store %arg9[%c0_39, %c0_40], %63 {strides = array<i32>} : memref<8x32xf32, #tpu.memory_space<vmem>>, vector<8x32xf32>,
    } else {
    }
    %c0 = arith.constant 0 : index
    %c0_1 = arith.constant 0 : index
    %3 = vector.load %arg2[%c0, %c0_1] : memref<32x16xf32, #tpu.memory_space<vmem>>, vector<32x16xf32>
    %c0_2 = arith.constant 0 : index
    %c0_3 = arith.constant 0 : index
    %4 = vector.load %arg3[%c0_2, %c0_3] : memref<16x32xf32, #tpu.memory_space<vmem>>, vector<16x32xf32>
    %cst = arith.constant dense<0.000000e+00> : vector<32x32xf32>
    %5 = tpu.matmul %3, %4, %cst {dimension_numbers = #tpu.dot_dimension_numbers<[1], [0], [0], [1], [0, 0, 1, 1], [], []>} : vector<32x16xf32>, vector<16x32xf32>, vector<32x32xf32> -> vector<32x32xf32>
    %c0_4 = arith.constant 0 : index
    %c0_5 = arith.constant 0 : index
    %6 = vector.load %arg5[%c0_4, %c0_5] : memref<1x32xf32, #tpu.memory_space<vmem>>, vector<1x32xf32>
    %7 = vector.broadcast %6 : vector<1x32xf32> to vector<32x32xf32>
    %8 = arith.addf %5, %7 : vector<32x32xf32>
    %c0_6 = arith.constant 0 : index
    %c0_7 = arith.constant 0 : index
    %9 = vector.load %arg10[%c0_6, %c0_7] : memref<32x32xf32, #tpu.memory_space<vmem>>, vector<32x32xf32>
    tpu.vector_store %arg10[%c0_6, %c0_7], %8 {strides = array<i32>} : memref<32x32xf32, #tpu.memory_space<vmem>>, vector<32x32xf32>,
    %c0_8 = arith.constant 0 : index
    %c0_9 = arith.constant 0 : index
    %10 = vector.load %arg4[%c0_8, %c0_9] : memref<32x32xf32, #tpu.memory_space<vmem>>, vector<32x32xf32>
    %c0_10 = arith.constant 0 : index
    %c0_11 = arith.constant 0 : index
    %11 = vector.load %arg6[%c0_10, %c0_11] : memref<32x128xf32, #tpu.memory_space<vmem>>, vector<32x128xf32>
    %c0_12 = arith.constant 0 : index
    %c0_13 = arith.constant 0 : index
    %12 = vector.load %arg7[%c0_12, %c0_13] : memref<1x128xf32, #tpu.memory_space<vmem>>, vector<1x128xf32>
    %c0_14 = arith.constant 0 : index
    %c0_15 = arith.constant 0 : index
    %13 = vector.load %arg9[%c0_14, %c0_15] : memref<8x32xf32, #tpu.memory_space<vmem>>, vector<8x32xf32>
    %c0_i32_16 = arith.constant 0 : i32
    %c8_i32 = arith.constant 8 : i32
    %14 = arith.muli %c0_i32_16, %c8_i32 : i32
    %15 = tpu.assume_multiple %14, 8 : i32
    %16 = arith.index_cast %15 : i32 to index
    %c0_17 = arith.constant 0 : index
    %17 = vector.load %arg10[%16, %c0_17] : memref<32x32xf32, #tpu.memory_space<vmem>>, vector<8x32xf32>
    %cst_18 = arith.constant dense<0.000000e+00> : vector<8x32xf32>
    %18 = tpu.matmul %13, %10, %cst_18 {dimension_numbers = #tpu.dot_dimension_numbers<[1], [0], [0], [1], [0, 0, 1, 1], [], []>} : vector<8x32xf32>, vector<32x32xf32>, vector<8x32xf32> -> vector<8x32xf32>
    %19 = arith.addf %17, %18 : vector<8x32xf32>
    %20 = math.tanh %19 : vector<8x32xf32>
    %cst_19 = arith.constant dense<0.000000e+00> : vector<8x128xf32>
    %21 = tpu.matmul %20, %11, %cst_19 {dimension_numbers = #tpu.dot_dimension_numbers<[1], [0], [0], [1], [0, 0, 1, 1], [], []>} : vector<8x32xf32>, vector<32x128xf32>, vector<8x128xf32> -> vector<8x128xf32>
    %22 = vector.broadcast %12 : vector<1x128xf32> to vector<8x128xf32>
    %23 = arith.addf %21, %22 : vector<8x128xf32>
    %24 = arith.index_cast %15 : i32 to index
    %c0_20 = arith.constant 0 : index
    %25 = vector.load %arg8[%24, %c0_20] : memref<32x128xf32, #tpu.memory_space<vmem>>, vector<8x128xf32>
    tpu.vector_store %arg8[%24, %c0_20], %23 {strides = array<i32>} : memref<32x128xf32, #tpu.memory_space<vmem>>, vector<8x128xf32>,
    %c1_i32 = arith.constant 1 : i32
    %c8_i32_21 = arith.constant 8 : i32
    %26 = arith.muli %c1_i32, %c8_i32_21 : i32
    %27 = tpu.assume_multiple %26, 8 : i32
    %28 = arith.index_cast %27 : i32 to index
    %c0_22 = arith.constant 0 : index
    %29 = vector.load %arg10[%28, %c0_22] : memref<32x32xf32, #tpu.memory_space<vmem>>, vector<8x32xf32>
    %cst_23 = arith.constant dense<0.000000e+00> : vector<8x32xf32>
    %30 = tpu.matmul %20, %10, %cst_23 {dimension_numbers = #tpu.dot_dimension_numbers<[1], [0], [0], [1], [0, 0, 1, 1], [], []>} : vector<8x32xf32>, vector<32x32xf32>, vector<8x32xf32> -> vector<8x32xf32>
    %31 = arith.addf %29, %30 : vector<8x32xf32>
    %32 = math.tanh %31 : vector<8x32xf32>
    %cst_24 = arith.constant dense<0.000000e+00> : vector<8x128xf32>
    %33 = tpu.matmul %32, %11, %cst_24 {dimension_numbers = #tpu.dot_dimension_numbers<[1], [0], [0], [1], [0, 0, 1, 1], [], []>} : vector<8x32xf32>, vector<32x128xf32>, vector<8x128xf32> -> vector<8x128xf32>
    %34 = vector.broadcast %12 : vector<1x128xf32> to vector<8x128xf32>
    %35 = arith.addf %33, %34 : vector<8x128xf32>
    %36 = arith.index_cast %27 : i32 to index
    %c0_25 = arith.constant 0 : index
    %37 = vector.load %arg8[%36, %c0_25] : memref<32x128xf32, #tpu.memory_space<vmem>>, vector<8x128xf32>
    tpu.vector_store %arg8[%36, %c0_25], %35 {strides = array<i32>} : memref<32x128xf32, #tpu.memory_space<vmem>>, vector<8x128xf32>,
    %c2_i32 = arith.constant 2 : i32
    %c8_i32_26 = arith.constant 8 : i32
    %38 = arith.muli %c2_i32, %c8_i32_26 : i32
    %39 = tpu.assume_multiple %38, 8 : i32
    %40 = arith.index_cast %39 : i32 to index
    %c0_27 = arith.constant 0 : index
    %41 = vector.load %arg10[%40, %c0_27] : memref<32x32xf32, #tpu.memory_space<vmem>>, vector<8x32xf32>
    %cst_28 = arith.constant dense<0.000000e+00> : vector<8x32xf32>
    %42 = tpu.matmul %32, %10, %cst_28 {dimension_numbers = #tpu.dot_dimension_numbers<[1], [0], [0], [1], [0, 0, 1, 1], [], []>} : vector<8x32xf32>, vector<32x32xf32>, vector<8x32xf32> -> vector<8x32xf32>
    %43 = arith.addf %41, %42 : vector<8x32xf32>
    %44 = math.tanh %43 : vector<8x32xf32>
    %cst_29 = arith.constant dense<0.000000e+00> : vector<8x128xf32>
    %45 = tpu.matmul %44, %11, %cst_29 {dimension_numbers = #tpu.dot_dimension_numbers<[1], [0], [0], [1], [0, 0, 1, 1], [], []>} : vector<8x32xf32>, vector<32x128xf32>, vector<8x128xf32> -> vector<8x128xf32>
    %46 = vector.broadcast %12 : vector<1x128xf32> to vector<8x128xf32>
    %47 = arith.addf %45, %46 : vector<8x128xf32>
    %48 = arith.index_cast %39 : i32 to index
    %c0_30 = arith.constant 0 : index
    %49 = vector.load %arg8[%48, %c0_30] : memref<32x128xf32, #tpu.memory_space<vmem>>, vector<8x128xf32>
    tpu.vector_store %arg8[%48, %c0_30], %47 {strides = array<i32>} : memref<32x128xf32, #tpu.memory_space<vmem>>, vector<8x128xf32>,
    %c3_i32 = arith.constant 3 : i32
    %c8_i32_31 = arith.constant 8 : i32
    %50 = arith.muli %c3_i32, %c8_i32_31 : i32
    %51 = tpu.assume_multiple %50, 8 : i32
    %52 = arith.index_cast %51 : i32 to index
    %c0_32 = arith.constant 0 : index
    %53 = vector.load %arg10[%52, %c0_32] : memref<32x32xf32, #tpu.memory_space<vmem>>, vector<8x32xf32>
    %cst_33 = arith.constant dense<0.000000e+00> : vector<8x32xf32>
    %54 = tpu.matmul %44, %10, %cst_33 {dimension_numbers = #tpu.dot_dimension_numbers<[1], [0], [0], [1], [0, 0, 1, 1], [], []>} : vector<8x32xf32>, vector<32x32xf32>, vector<8x32xf32> -> vector<8x32xf32>
    %55 = arith.addf %53, %54 : vector<8x32xf32>
    %56 = math.tanh %55 : vector<8x32xf32>
    %cst_34 = arith.constant dense<0.000000e+00> : vector<8x128xf32>
    %57 = tpu.matmul %56, %11, %cst_34 {dimension_numbers = #tpu.dot_dimension_numbers<[1], [0], [0], [1], [0, 0, 1, 1], [], []>} : vector<8x32xf32>, vector<32x128xf32>, vector<8x128xf32> -> vector<8x128xf32>
    %58 = vector.broadcast %12 : vector<1x128xf32> to vector<8x128xf32>
    %59 = arith.addf %57, %58 : vector<8x128xf32>
    %60 = arith.index_cast %51 : i32 to index
    %c0_35 = arith.constant 0 : index
    %61 = vector.load %arg8[%60, %c0_35] : memref<32x128xf32, #tpu.memory_space<vmem>>, vector<8x128xf32>
    tpu.vector_store %arg8[%60, %c0_35], %59 {strides = array<i32>} : memref<32x128xf32, #tpu.memory_space<vmem>>, vector<8x128xf32>,
    %c4_i32 = arith.constant 4 : i32
    %c0_36 = arith.constant 0 : index
    %c0_37 = arith.constant 0 : index
    %62 = vector.load %arg9[%c0_36, %c0_37] : memref<8x32xf32, #tpu.memory_space<vmem>>, vector<8x32xf32>
    tpu.vector_store %arg9[%c0_36, %c0_37], %56 {strides = array<i32>} : memref<8x32xf32, #tpu.memory_space<vmem>>, vector<8x32xf32>,
    return
  }
  func.func @transform_0(%arg0: i32, %arg1: i32) -> (i32, i32) {
    %c2_i32 = arith.constant 2 : i32
    %0 = arith.muli %arg0, %c2_i32 : i32
    %1 = arith.addi %0, %arg1 : i32
    %c0_i32 = arith.constant 0 : i32
    %c0_i32_0 = arith.constant 0 : i32
    return %1, %c0_i32 : i32, i32
  }
  func.func @transform_1(%arg0: i32, %arg1: i32) -> (i32, i32) {
    %c0_i32 = arith.constant 0 : i32
    %c0_i32_0 = arith.constant 0 : i32
    %c0_i32_1 = arith.constant 0 : i32
    return %c0_i32, %c0_i32_0 : i32, i32
  }
  func.func @transform_2(%arg0: i32, %arg1: i32) -> (i32, i32) {
    %c0_i32 = arith.constant 0 : i32
    %c0_i32_0 = arith.constant 0 : i32
    %c0_i32_1 = arith.constant 0 : i32
    return %c0_i32, %c0_i32_0 : i32, i32
  }
  func.func @transform_3(%arg0: i32, %arg1: i32) -> (i32, i32) {
    %c0_i32 = arith.constant 0 : i32
    %c0_i32_0 = arith.constant 0 : i32
    %c0_i32_1 = arith.constant 0 : i32
    return %c0_i32, %c0_i32_0 : i32, i32
  }
  func.func @transform_4(%arg0: i32, %arg1: i32) -> (i32, i32) {
    %c0_i32 = arith.constant 0 : i32
    %c0_i32_0 = arith.constant 0 : i32
    %c0_i32_1 = arith.constant 0 : i32
    return %c0_i32, %c0_i32_0 : i32, i32
  }
  func.func @transform_5(%arg0: i32, %arg1: i32) -> (i32, i32) {
    %c0_i32 = arith.constant 0 : i32
    %c0_i32_0 = arith.constant 0 : i32
    %c0_i32_1 = arith.constant 0 : i32
    return %c0_i32, %c0_i32_0 : i32, i32
  }
  func.func @transform_6(%arg0: i32, %arg1: i32) -> (i32, i32) {
    %c2_i32 = arith.constant 2 : i32
    %0 = arith.muli %arg0, %c2_i32 : i32
    %1 = arith.addi %0, %arg1 : i32
    %c0_i32 = arith.constant 0 : i32
    %c0_i32_0 = arith.constant 0 : i32
    return %1, %c0_i32 : i32, i32
  }
}

</mosaic_0001>

<llo_original>
// kernel: rnn_cell_tagger_forward.1
$region0: #{rnn_cell_tagger_forward.1}
  #allocation0 [shape = 'u32[]', space=smem, size = 0x4, offset = 0x4, fixed_abs, tag = 'smem constant byte address 0x4 - core index']
  #allocation1 [shape = 'u32[72,128]{1,0:T(1,128)}', space=vmem, size = 0x9000, scoped, tag = 'internal scratch']
  #allocation2 [shape = 'f32[8,32]{1,0:T(8,128)}', space=vmem, size = 0x1000, scoped, tag = 'scratch operand']
  #allocation3 [shape = 'f32[32,32]{1,0:T(8,128)}', space=vmem, size = 0x4000, scoped, tag = 'scratch operand']
  %s0 = inlined_call_operand.vmem [shape: f32[64,16], index: 0, kind: input, shape index: {}]
  %s1 = inlined_call_operand.vmem [shape: f32[16,32], index: 1, kind: input, shape index: {}]
  %s2 = inlined_call_operand.vmem [shape: f32[32,32], index: 2, kind: input, shape index: {}]
  %s3 = inlined_call_operand.vmem [shape: f32[1,32], index: 3, kind: input, shape index: {}]
  %s4 = inlined_call_operand.vmem [shape: f32[32,128], index: 4, kind: input, shape index: {}]
  %s5 = inlined_call_operand.vmem [shape: f32[1,128], index: 5, kind: input, shape index: {}]
  %s6 = inlined_call_operand.vmem [shape: f32[64,128], index: 6, kind: output, shape index: {}]
  %s7 = sld [smem:[#allocation0]]
  $region61: #{rnn_cell_tagger_forward.1} parent=0
    _
  %s9 = ssub.s32 1, %s7
  %s10 = scalar_select 0, %s9, %s7
  loop: start=0, step=1, limit=4
  $region2: #{rnn_cell_tagger_forward.1} parent=0 // loop_pre_header
    _
  $region3: #{rnn_cell_tagger_forward.1} parent=0 // loop_header
    %s12 = sphi 0, %s16
    %p13 = scmp.ge.s32.totalorder %s12, 4
    %s19 = sphi 0, %s31
    %s20 = sphi 0, %s27
    %s21 = sphi 0, %s19
    %s22 = sphi 0, %s20
    %s23 = sphi 0, %s21
    %s24 = sphi 0, %s22
    %s38 = sphi 0, %s40
    %s41 = sphi 0, %s38
    %s42 = sphi 0, %s41
    %s58 = sphi 0, %s42
    %s62 = sphi 0, %s62
    %s64 = sphi 0, %s62
    %s65 = sphi 0, %s64
    %s79 = sphi 0, %s65
    %s83 = sphi 0, %s83
    %s85 = sphi 0, %s83
    %s86 = sphi 0, %s85
    %s100 = sphi 0, %s86
    %s104 = sphi 0, %s104
    %s106 = sphi 0, %s104
    %s107 = sphi 0, %s106
    %s121 = sphi 0, %s107
    %s125 = sphi 0, %s125
    %s127 = sphi 0, %s125
    %s128 = sphi 0, %s127
    %s142 = sphi 0, %s128
    %s146 = sphi 0, %s146
    %s148 = sphi 0, %s146
    %s149 = sphi 0, %s148
    %s163 = sphi 0, %s149
    %s173 = sphi 0, %s175
    %s176 = sphi 0, %s173
    %s177 = sphi 0, %s176
    %s193 = sphi 0, %s177
  $region4: #{rnn_cell_tagger_forward.1} parent=0 // loop_header_branch
    %15 = sbr.rel (%p13) target = $region8
  $region5: #{rnn_cell_tagger_forward.1} parent=0 // loop_body
    %s17 = ssub.s32 %s12, 1
    %s18 = ssub.s32 %s12, 2
    %s25 = sadd.s32 1, %s20
    %p26 = scmp.ge.s32.totalorder %s25, 2
    %s27 = scalar_select %p26, 0, %s25
    %s28 = sadd.s32 1, %s19
    %s29 = scalar_select %p26, %s28, %s19
    %p30 = scmp.ge.s32.totalorder %s29, 1
    %s31 = scalar_select %p30, 0, %s29
    %s32 = smul.u32 %s19, 2
    %s33 = sadd.s32 %s32, %s20
    %s34 = smul.u32 %s31, 2
    %s35 = sadd.s32 %s34, %s27
    %s36 = ssub.s32 %s33, %s35
    %p37 = scmp.eq.s32.totalorder %s36, 0
    %s39 = sadd.s32 %s38, 1
    %s40 = scalar_select %p37, %s38, %s39
    %p43 = pneg %p37
    %p44 = scmp.eq.s32.totalorder %s12, 1
    %p45 = por %p43, %p44
    %p46 = scmp.ne.s32.totalorder %s38, %s41
    %p47 = scmp.eq.s32.totalorder %s12, 0
    %p48 = por %p46, %p47
    %p49 = scmp.ne.s32.totalorder %s38, %s41
    %p50 = scmp.eq.s32.totalorder %s17, 1
    %p51 = por %p49, %p50
    %p52 = scmp.ne.s32.totalorder %s41, %s42
    %p53 = scmp.eq.s32.totalorder %s17, 0
    %p54 = por %p52, %p53
    %p55 = scmp.ne.s32.totalorder %s41, %s42
    %p56 = scmp.eq.s32.totalorder %s18, 1
    %p57 = por %p55, %p56
    %p59 = scmp.ne.s32.totalorder %s42, %s58
    %p60 = scmp.eq.s32.totalorder %s18, 0
    %p61 = por %p59, %p60
    %s63 = sadd.s32 %s62, 1
    %p66 = scmp.eq.s32.totalorder %s12, 1
    %p67 = scmp.ne.s32.totalorder %s62, %s64
    %p68 = scmp.eq.s32.totalorder %s12, 0
    %p69 = por %p67, %p68
    %p70 = scmp.ne.s32.totalorder %s62, %s64
    %p71 = scmp.eq.s32.totalorder %s17, 1
    %p72 = por %p70, %p71
    %p73 = scmp.ne.s32.totalorder %s64, %s65
    %p74 = scmp.eq.s32.totalorder %s17, 0
    %p75 = por %p73, %p74
    %p76 = scmp.ne.s32.totalorder %s64, %s65
    %p77 = scmp.eq.s32.totalorder %s18, 1
    %p78 = por %p76, %p77
    %p80 = scmp.ne.s32.totalorder %s65, %s79
    %p81 = scmp.eq.s32.totalorder %s18, 0
    %p82 = por %p80, %p81
    %s84 = sadd.s32 %s83, 1
    %p87 = scmp.eq.s32.totalorder %s12, 1
    %p88 = scmp.ne.s32.totalorder %s83, %s85
    %p89 = scmp.eq.s32.totalorder %s12, 0
    %p90 = por %p88, %p89
    %p91 = scmp.ne.s32.totalorder %s83, %s85
    %p92 = scmp.eq.s32.totalorder %s17, 1
    %p93 = por %p91, %p92
    %p94 = scmp.ne.s32.totalorder %s85, %s86
    %p95 = scmp.eq.s32.totalorder %s17, 0
    %p96 = por %p94, %p95
    %p97 = scmp.ne.s32.totalorder %s85, %s86
    %p98 = scmp.eq.s32.totalorder %s18, 1
    %p99 = por %p97, %p98
    %p101 = scmp.ne.s32.totalorder %s86, %s100
    %p102 = scmp.eq.s32.totalorder %s18, 0
    %p103 = por %p101, %p102
    %s105 = sadd.s32 %s104, 1
    %p108 = scmp.eq.s32.totalorder %s12, 1
    %p109 = scmp.ne.s32.totalorder %s104, %s106
    %p110 = scmp.eq.s32.totalorder %s12, 0
    %p111 = por %p109, %p110
    %p112 = scmp.ne.s32.totalorder %s104, %s106
    %p113 = scmp.eq.s32.totalorder %s17, 1
    %p114 = por %p112, %p113
    %p115 = scmp.ne.s32.totalorder %s106, %s107
    %p116 = scmp.eq.s32.totalorder %s17, 0
    %p117 = por %p115, %p116
    %p118 = scmp.ne.s32.totalorder %s106, %s107
    %p119 = scmp.eq.s32.totalorder %s18, 1
    %p120 = por %p118, %p119
    %p122 = scmp.ne.s32.totalorder %s107, %s121
    %p123 = scmp.eq.s32.totalorder %s18, 0
    %p124 = por %p122, %p123
    %s126 = sadd.s32 %s125, 1
    %p129 = scmp.eq.s32.totalorder %s12, 1
    %p130 = scmp.ne.s32.totalorder %s125, %s127
    %p131 = scmp.eq.s32.totalorder %s12, 0
    %p132 = por %p130, %p131
    %p133 = scmp.ne.s32.totalorder %s125, %s127
    %p134 = scmp.eq.s32.totalorder %s17, 1
    %p135 = por %p133, %p134
    %p136 = scmp.ne.s32.totalorder %s127, %s128
    %p137 = scmp.eq.s32.totalorder %s17, 0
    %p138 = por %p136, %p137
    %p139 = scmp.ne.s32.totalorder %s127, %s128
    %p140 = scmp.eq.s32.totalorder %s18, 1
    %p141 = por %p139, %p140
    %p143 = scmp.ne.s32.totalorder %s128, %s142
    %p144 = scmp.eq.s32.totalorder %s18, 0
    %p145 = por %p143, %p144
    %s147 = sadd.s32 %s146, 1
    %p150 = scmp.eq.s32.totalorder %s12, 1
    %p151 = scmp.ne.s32.totalorder %s146, %s148
    %p152 = scmp.eq.s32.totalorder %s12, 0
    %p153 = por %p151, %p152
    %p154 = scmp.ne.s32.totalorder %s146, %s148
    %p155 = scmp.eq.s32.totalorder %s17, 1
    %p156 = por %p154, %p155
    %p157 = scmp.ne.s32.totalorder %s148, %s149
    %p158 = scmp.eq.s32.totalorder %s17, 0
    %p159 = por %p157, %p158
    %p160 = scmp.ne.s32.totalorder %s148, %s149
    %p161 = scmp.eq.s32.totalorder %s18, 1
    %p162 = por %p160, %p161
    %p164 = scmp.ne.s32.totalorder %s149, %s163
    %p165 = scmp.eq.s32.totalorder %s18, 0
    %p166 = por %p164, %p165
    %s167 = smul.u32 %s19, 2
    %s168 = sadd.s32 %s167, %s20
    %s169 = smul.u32 %s31, 2
    %s170 = sadd.s32 %s169, %s27
    %s171 = ssub.s32 %s168, %s170
    %p172 = scmp.eq.s32.totalorder %s171, 0
    %s174 = sadd.s32 %s173, 1
    %s175 = scalar_select %p172, %s173, %s174
    %p178 = pneg %p172
    %p179 = scmp.eq.s32.totalorder %s12, 1
    %p180 = por %p178, %p179
    %p181 = scmp.ne.s32.totalorder %s173, %s176
    %p182 = scmp.eq.s32.totalorder %s12, 0
    %p183 = por %p181, %p182
    %p184 = scmp.ne.s32.totalorder %s173, %s176
    %p185 = scmp.eq.s32.totalorder %s17, 1
    %p186 = por %p184, %p185
    %p187 = scmp.ne.s32.totalorder %s176, %s177
    %p188 = scmp.eq.s32.totalorder %s17, 0
    %p189 = por %p187, %p188
    %p190 = scmp.ne.s32.totalorder %s176, %s177
    %p191 = scmp.eq.s32.totalorder %s18, 1
    %p192 = por %p190, %p191
    %p194 = scmp.ne.s32.totalorder %s177, %s193
    %p195 = scmp.eq.s32.totalorder %s18, 0
    %p196 = por %p194, %p195
    %p197 = scmp.le.s32.totalorder 1, %s12
    %p198 = scmp.lt.s32.totalorder %s12, 3
    %p199 = pnand %p197, %p198
    %p200 = pneg %p199
    // Predicated region
    $region9: #{rnn_cell_tagger_forward.1} parent=5 // pred_check
      _
    $region10: #{rnn_cell_tagger_forward.1} parent=5 // pred_check_branch
      %202 = sbr.rel (%p199) target = $region12
    $region11: #{rnn_cell_tagger_forward.1} parent=5 // pred_region
      %s203 = ssub.s32 %s12, 1
      // Predicated region
      $region13: #{rnn_cell_tagger_forward.1} parent=11 // pred_check
        %p204 = pneg %p75
      $region14: #{rnn_cell_tagger_forward.1} parent=11 // pred_check_branch
        %206 = sbr.rel (%p204) target = $region16
      $region15: #{rnn_cell_tagger_forward.1} parent=11 // pred_region
        _
      $region16: #{rnn_cell_tagger_forward.1} parent=11 // pred_fallthru
        _
      // Predicated region
      $region17: #{rnn_cell_tagger_forward.1} parent=11 // pred_check
        %p207 = pneg %p96
      $region18: #{rnn_cell_tagger_forward.1} parent=11 // pred_check_branch
        %209 = sbr.rel (%p207) target = $region20
      $region19: #{rnn_cell_tagger_forward.1} parent=11 // pred_region
        _
      $region20: #{rnn_cell_tagger_forward.1} parent=11 // pred_fallthru
        _
      // Predicated region
      $region21: #{rnn_cell_tagger_forward.1} parent=11 // pred_check
        %p210 = pneg %p117
      $region22: #{rnn_cell_tagger_forward.1} parent=11 // pred_check_branch
        %212 = sbr.rel (%p210) target = $region24
      $region23: #{rnn_cell_tagger_forward.1} parent=11 // pred_region
        _
      $region24: #{rnn_cell_tagger_forward.1} parent=11 // pred_fallthru
        _
      // Predicated region
      $region25: #{rnn_cell_tagger_forward.1} parent=11 // pred_check
        %p213 = pneg %p138
      $region26: #{rnn_cell_tagger_forward.1} parent=11 // pred_check_branch
        %215 = sbr.rel (%p213) target = $region28
      $region27: #{rnn_cell_tagger_forward.1} parent=11 // pred_region
        _
      $region28: #{rnn_cell_tagger_forward.1} parent=11 // pred_fallthru
        _
      // Predicated region
      $region29: #{rnn_cell_tagger_forward.1} parent=11 // pred_check
        %p216 = pneg %p159
      $region30: #{rnn_cell_tagger_forward.1} parent=11 // pred_check_branch
        %218 = sbr.rel (%p216) target = $region32
      $region31: #{rnn_cell_tagger_forward.1} parent=11 // pred_region
        _
      $region32: #{rnn_cell_tagger_forward.1} parent=11 // pred_fallthru
        _
    $region12: #{rnn_cell_tagger_forward.1} parent=5 // pred_fallthru
      _
    %p219 = scmp.lt.s32.totalorder %s12, 2
    // Predicated region
    $region33: #{rnn_cell_tagger_forward.1} parent=5 // pred_check
      %p220 = pneg %p219
    $region34: #{rnn_cell_tagger_forward.1} parent=5 // pred_check_branch
      %222 = sbr.rel (%p220) target = $region36
    $region35: #{rnn_cell_tagger_forward.1} parent=5 // pred_region
      // Predicated region
      $region37: #{rnn_cell_tagger_forward.1} parent=35 // pred_check
        %p223 = pneg %p48
      $region38: #{rnn_cell_tagger_forward.1} parent=35 // pred_check_branch
        %225 = sbr.rel (%p223) target = $region40
      $region39: #{rnn_cell_tagger_forward.1} parent=35 // pred_region
        %s226 = smul.u32 %s19, 2
        %s227 = sadd.s32 %s226, %s20
        %s228 = smul.u32 4, %s227
        %p229 = scmp.lt.s32.totalorder %s228, 7
        %s230 = scalar_select %p229, %s228, 7
        %s231 = smul.addr %s230, 8
        %s232 = scalar_lea.vmem %s0, %s231
        %s233 = smul.u32 %s19, 2
        %s234 = sadd.s32 %s233, %s20
        %s235 = smul.u32 4, %s234
      $region40: #{rnn_cell_tagger_forward.1} parent=35 // pred_fallthru
        _
    $region36: #{rnn_cell_tagger_forward.1} parent=5 // pred_fallthru
      _
    %p236 = scmp.le.s32.totalorder 1, %s12
    %p237 = scmp.lt.s32.totalorder %s12, 3
    %p238 = pnand %p236, %p237
    %p239 = pneg %p238
    // Predicated region
    $region41: #{rnn_cell_tagger_forward.1} parent=5 // pred_check
      _
    $region42: #{rnn_cell_tagger_forward.1} parent=5 // pred_check_branch
      %241 = sbr.rel (%p238) target = $region44
    $region43: #{rnn_cell_tagger_forward.1} parent=5 // pred_region
      %s242 = ssub.s32 %s12, 1
      %s243 = smul.u32 %s21, 2
      %s244 = sadd.s32 %s243, %s22
      %s245 = smul.u32 4, %s244
      %p246 = scmp.lt.s32.totalorder %s245, 7
      %s247 = scalar_select %p246, %s245, 7
      %s248 = smul.addr %s247, 8
      %s249 = scalar_lea.vmem %s0, %s248
      %p250 = pneg %p54
      %p251 = pneg %p51
      %p252 = pneg %p75
      %p253 = pneg %p72
      %p254 = pneg %p96
      %p255 = pneg %p93
      %p256 = pneg %p117
      %p257 = pneg %p114
      %p258 = pneg %p138
      %p259 = pneg %p135
      %p260 = pneg %p159
      %p261 = pneg %p156
      %p262 = pneg %p189
      %p263 = pneg %p186
      %s264 = smul.u32 %s21, 2
      %s265 = sadd.s32 %s264, %s22
      %s266 = smul.u32 4, %s265
      %p267 = scmp.lt.s32.totalorder %s266, 7
      %s268 = scalar_select %p267, %s266, 7
      %s269 = smul.addr %s268, 8
      %s270 = scalar_lea.vmem %s6, %s269
      %s271 = smul.u32 %s21, 2
      %s272 = sadd.s32 %s271, %s22
      %s273 = smul.u32 4, %s272
      %p274 = scmp.lt.s32.totalorder %s273, 7
      %s275 = scalar_select %p274, %s273, 7
      %s276 = smul.addr %s275, 8
      %s277 = scalar_lea.vmem %s0, %s276
      %s278 = smul.u32 %s21, 2
      %s279 = sadd.s32 %s278, %s22
      %s280 = smul.u32 4, %s279
      %s281 = smul.u32 %s21, 2
      %s282 = sadd.s32 %s281, %s22
      %s283 = smul.u32 4, %s282
      %p284 = scmp.lt.s32.totalorder %s283, 7
      %s285 = scalar_select %p284, %s283, 7
      %s286 = smul.addr %s285, 8
      %s287 = scalar_lea.vmem %s6, %s286
      %s288 = smul.u32 %s21, 2
      %s289 = sadd.s32 %s288, %s22
      %s290 = smul.u32 4, %s289
      %p291 = scmp.eq.s32.totalorder %s22, 0
      // Predicated region
      $region45: #{rnn_cell_tagger_forward.1} parent=43 // pred_check
        %p292 = pneg %p291
      $region46: #{rnn_cell_tagger_forward.1} parent=43 // pred_check_branch
        %294 = sbr.rel (%p292) target = $region48
      $region47: #{rnn_cell_tagger_forward.1} parent=43 // pred_region
        %vm295 = vcmask 261120
        %296 = vst.msk [vmem:[#allocation2] sm:$0xff] %vm295, 0.0
      $region48: #{rnn_cell_tagger_forward.1} parent=43 // pred_fallthru
        _
      %v297 = vld [vmem:[%s277] sm:$0xff]
      %v298 = vld [vmem:[%s277 + $0x8] sm:$0xff]
      %v299 = vld [vmem:[%s277 + $0x10] sm:$0xff]
      %v300 = vld [vmem:[%s277 + $0x18] sm:$0xff]
      %v301 = vld [vmem:[%s1] sm:$0xff]
      %v302 = vld [vmem:[%s1 + $0x8] sm:$0xff]
      %v303 = vld [vmem:[%s3] sm:$0x1]
      %v305 = vperm.slane %v303, 0
      %vm307 = vcmask 130048
      %v309 = vsel %vm307, %v297, 0
      %v312 = vsel %vm307, %v298, 0
      %v315 = vsel %vm307, %v299, 0
      %v318 = vsel %vm307, %v300, 0
      %320 = vmatpush.msra.mxu0 0.0
      %321 = vmatpush.msra.mxu0 0.0
      %322 = vmatpush.msra.mxu0 0.0
      %323 = vmatpush.msra.mxu0 0.0
      %324 = vmatpush.msra.mxu0 0.0
      %325 = vmatpush.msra.mxu0 0.0
      %326 = vmatpush.msra.mxu0 0.0
      %327 = vmatpush.msra.mxu0 0.0
      %328 = vmatpush.msra.mxu0 0.0
      %329 = vmatpush.msra.mxu0 0.0
      %330 = vmatpush.msra.mxu0 0.0
      %331 = vmatpush.msra.mxu0 0.0
      %332 = vmatpush.msra.mxu0 0.0
      %333 = vmatpush.msra.mxu0 0.0
      %334 = vmatpush.msra.mxu0 %v302
      %335 = vmatpush.msra.mxu0 %v301
      %336 = vmatmul.f32.gmra.mxu0 %v309
      %v337 = vpop.f32.mrf.mxu0
      %v338 = vadd.f32 %v305, %v337
      %339 = vmatmul.f32.gmra.mxu0 %v312
      %v340 = vpop.f32.mrf.mxu0
      %v341 = vadd.f32 %v305, %v340
      %342 = vmatmul.f32.gmra.mxu0 %v315
      %v343 = vpop.f32.mrf.mxu0
      %v344 = vadd.f32 %v305, %v343
      %345 = vmatmul.f32.gmra.mxu0 %v318
      %v346 = vpop.f32.mrf.mxu0
      %v347 = vadd.f32 %v305, %v346
      %348 = vdwg.mxu0
      %vm349 = vcmask 261120
      %350 = vst.msk [vmem:[#allocation3] sm:$0xff] %vm349, %v338
      %351 = vst.msk [vmem:[#allocation3 + $0x8] sm:$0xff] %vm349, %v341
      %352 = vst.msk [vmem:[#allocation3 + $0x10] sm:$0xff] %vm349, %v344
      %353 = vst.msk [vmem:[#allocation3 + $0x18] sm:$0xff] %vm349, %v347
      %v354 = vld [vmem:[%s2] sm:$0xff]
      %v355 = vld [vmem:[%s2 + $0x8] sm:$0xff]
      %v356 = vld [vmem:[%s2 + $0x10] sm:$0xff]
      %v357 = vld [vmem:[%s2 + $0x18] sm:$0xff]
      %v358 = vld [vmem:[%s4] sm:$0xff]
      %v359 = vld [vmem:[%s4 + $0x8] sm:$0xff]
      %v360 = vld [vmem:[%s4 + $0x10] sm:$0xff]
      %v361 = vld [vmem:[%s4 + $0x18] sm:$0xff]
      %v362 = vld [vmem:[%s5] sm:$0x1]
      %v363 = vld [vmem:[#allocation2] sm:$0xff]
      %v364 = vld [vmem:[#allocation3] sm:$0xff]
      %v366 = vsel %vm349, %v363, 0
      %368 = vmatpush.msra.mxu0 0.0
      %369 = vmatpush.msra.mxu0 0.0
      %370 = vmatpush.msra.mxu0 0.0
      %371 = vmatpush.msra.mxu0 0.0
      %372 = vmatpush.msra.mxu0 0.0
      %373 = vmatpush.msra.mxu0 0.0
      %374 = vmatpush.msra.mxu0 0.0
      %375 = vmatpush.msra.mxu0 0.0
      %376 = vmatpush.msra.mxu0 0.0
      %377 = vmatpush.msra.mxu0 0.0
      %378 = vmatpush.msra.mxu0 0.0
      %379 = vmatpush.msra.mxu0 0.0
      %380 = vmatpush.msra.mxu0 %v357
      %381 = vmatpush.msra.mxu0 %v356
      %382 = vmatpush.msra.mxu0 %v355
      %383 = vmatpush.msra.mxu0 %v354
      %384 = vmatmul.f32.gmra.mxu0 %v366
      %v385 = vpop.f32.mrf.mxu0
      %v386 = vadd.f32 0.0, %v385
      %387 = vdwg.mxu0
      %v388 = vadd.f32 %v364, %v386
      %v389 = vtanh.pop %v388
      %v391 = vperm.slane %v362, 0
      %v394 = vsel %vm349, %v389, 0
      %396 = vmatpush.msra.mxu0 0.0
      %397 = vmatpush.msra.mxu0 0.0
      %398 = vmatpush.msra.mxu0 0.0
      %399 = vmatpush.msra.mxu0 0.0
      %400 = vmatpush.msra.mxu0 0.0
      %401 = vmatpush.msra.mxu0 0.0
      %402 = vmatpush.msra.mxu0 0.0
      %403 = vmatpush.msra.mxu0 0.0
      %404 = vmatpush.msra.mxu0 0.0
      %405 = vmatpush.msra.mxu0 0.0
      %406 = vmatpush.msra.mxu0 0.0
      %407 = vmatpush.msra.mxu0 0.0
      %408 = vmatpush.msra.mxu0 %v361
      %409 = vmatpush.msra.mxu0 %v360
      %410 = vmatpush.msra.mxu0 %v359
      %411 = vmatpush.msra.mxu0 %v358
      %412 = vmatmul.f32.gmra.mxu0 %v394
      %v413 = vpop.f32.mrf.mxu0
      %v414 = vadd.f32 %v391, %v413
      %415 = vdwg.mxu0
      %416 = vst [vmem:[%s287] sm:$0xff] %v414
      %s417 = scalar_lea.vmem [#allocation3], 8
      %v418 = vld [vmem:[%s417] sm:$0xff]
      %419 = vmatpush.msra.mxu0 0.0
      %420 = vmatpush.msra.mxu0 0.0
      %421 = vmatpush.msra.mxu0 0.0
      %422 = vmatpush.msra.mxu0 0.0
      %423 = vmatpush.msra.mxu0 0.0
      %424 = vmatpush.msra.mxu0 0.0
      %425 = vmatpush.msra.mxu0 0.0
      %426 = vmatpush.msra.mxu0 0.0
      %427 = vmatpush.msra.mxu0 0.0
      %428 = vmatpush.msra.mxu0 0.0
      %429 = vmatpush.msra.mxu0 0.0
      %430 = vmatpush.msra.mxu0 0.0
      %431 = vmatpush.msra.mxu0 %v357
      %432 = vmatpush.msra.mxu0 %v356
      %433 = vmatpush.msra.mxu0 %v355
      %434 = vmatpush.msra.mxu0 %v354
      %435 = vmatmul.f32.gmra.mxu0 %v394
      %v436 = vpop.f32.mrf.mxu0
      %v437 = vadd.f32 0.0, %v436
      %438 = vdwg.mxu0
      %v439 = vadd.f32 %v418, %v437
      %v440 = vtanh.pop %v439
      %v442 = vsel %vm349, %v440, 0
      %444 = vmatpush.msra.mxu0 0.0
      %445 = vmatpush.msra.mxu0 0.0
      %446 = vmatpush.msra.mxu0 0.0
      %447 = vmatpush.msra.mxu0 0.0
      %448 = vmatpush.msra.mxu0 0.0
      %449 = vmatpush.msra.mxu0 0.0
      %450 = vmatpush.msra.mxu0 0.0
      %451 = vmatpush.msra.mxu0 0.0
      %452 = vmatpush.msra.mxu0 0.0
      %453 = vmatpush.msra.mxu0 0.0
      %454 = vmatpush.msra.mxu0 0.0
      %455 = vmatpush.msra.mxu0 0.0
      %456 = vmatpush.msra.mxu0 %v361
      %457 = vmatpush.msra.mxu0 %v360
      %458 = vmatpush.msra.mxu0 %v359
      %459 = vmatpush.msra.mxu0 %v358
      %460 = vmatmul.f32.gmra.mxu0 %v442
      %v461 = vpop.f32.mrf.mxu0
      %v462 = vadd.f32 %v391, %v461
      %463 = vdwg.mxu0
      %s464 = scalar_lea.vmem %s287, 8
      %465 = vst [vmem:[%s464] sm:$0xff] %v462
      %s466 = scalar_lea.vmem [#allocation3], 16
      %v467 = vld [vmem:[%s466] sm:$0xff]
      %468 = vmatpush.msra.mxu0 0.0
      %469 = vmatpush.msra.mxu0 0.0
      %470 = vmatpush.msra.mxu0 0.0
      %471 = vmatpush.msra.mxu0 0.0
      %472 = vmatpush.msra.mxu0 0.0
      %473 = vmatpush.msra.mxu0 0.0
      %474 = vmatpush.msra.mxu0 0.0
      %475 = vmatpush.msra.mxu0 0.0
      %476 = vmatpush.msra.mxu0 0.0
      %477 = vmatpush.msra.mxu0 0.0
      %478 = vmatpush.msra.mxu0 0.0
      %479 = vmatpush.msra.mxu0 0.0
      %480 = vmatpush.msra.mxu0 %v357
      %481 = vmatpush.msra.mxu0 %v356
      %482 = vmatpush.msra.mxu0 %v355
      %483 = vmatpush.msra.mxu0 %v354
      %484 = vmatmul.f32.gmra.mxu0 %v442
      %v485 = vpop.f32.mrf.mxu0
      %v486 = vadd.f32 0.0, %v485
      %487 = vdwg.mxu0
      %v488 = vadd.f32 %v467, %v486
      %v489 = vtanh.pop %v488
      %v491 = vsel %vm349, %v489, 0
      %493 = vmatpush.msra.mxu0 0.0
      %494 = vmatpush.msra.mxu0 0.0
      %495 = vmatpush.msra.mxu0 0.0
      %496 = vmatpush.msra.mxu0 0.0
      %497 = vmatpush.msra.mxu0 0.0
      %498 = vmatpush.msra.mxu0 0.0
      %499 = vmatpush.msra.mxu0 0.0
      %500 = vmatpush.msra.mxu0 0.0
      %501 = vmatpush.msra.mxu0 0.0
      %502 = vmatpush.msra.mxu0 0.0
      %503 = vmatpush.msra.mxu0 0.0
      %504 = vmatpush.msra.mxu0 0.0
      %505 = vmatpush.msra.mxu0 %v361
      %506 = vmatpush.msra.mxu0 %v360
      %507 = vmatpush.msra.mxu0 %v359
      %508 = vmatpush.msra.mxu0 %v358
      %509 = vmatmul.f32.gmra.mxu0 %v491
      %v510 = vpop.f32.mrf.mxu0
      %v511 = vadd.f32 %v391, %v510
      %512 = vdwg.mxu0
      %s513 = scalar_lea.vmem %s287, 16
      %514 = vst [vmem:[%s513] sm:$0xff] %v511
      %s515 = scalar_lea.vmem [#allocation3], 24
      %v516 = vld [vmem:[%s515] sm:$0xff]
      %517 = vmatpush.msra.mxu0 0.0
      %518 = vmatpush.msra.mxu0 0.0
      %519 = vmatpush.msra.mxu0 0.0
      %520 = vmatpush.msra.mxu0 0.0
      %521 = vmatpush.msra.mxu0 0.0
      %522 = vmatpush.msra.mxu0 0.0
      %523 = vmatpush.msra.mxu0 0.0
      %524 = vmatpush.msra.mxu0 0.0
      %525 = vmatpush.msra.mxu0 0.0
      %526 = vmatpush.msra.mxu0 0.0
      %527 = vmatpush.msra.mxu0 0.0
      %528 = vmatpush.msra.mxu0 0.0
      %529 = vmatpush.msra.mxu0 %v357
      %530 = vmatpush.msra.mxu0 %v356
      %531 = vmatpush.msra.mxu0 %v355
      %532 = vmatpush.msra.mxu0 %v354
      %533 = vmatmul.f32.gmra.mxu0 %v491
      %v534 = vpop.f32.mrf.mxu0
      %v535 = vadd.f32 0.0, %v534
      %536 = vdwg.mxu0
      %v537 = vadd.f32 %v516, %v535
      %v538 = vtanh.pop %v537
      %v540 = vsel %vm349, %v538, 0
      %542 = vmatpush.msra.mxu0 0.0
      %543 = vmatpush.msra.mxu0 0.0
      %544 = vmatpush.msra.mxu0 0.0
      %545 = vmatpush.msra.mxu0 0.0
      %546 = vmatpush.msra.mxu0 0.0
      %547 = vmatpush.msra.mxu0 0.0
      %548 = vmatpush.msra.mxu0 0.0
      %549 = vmatpush.msra.mxu0 0.0
      %550 = vmatpush.msra.mxu0 0.0
      %551 = vmatpush.msra.mxu0 0.0
      %552 = vmatpush.msra.mxu0 0.0
      %553 = vmatpush.msra.mxu0 0.0
      %554 = vmatpush.msra.mxu0 %v361
      %555 = vmatpush.msra.mxu0 %v360
      %556 = vmatpush.msra.mxu0 %v359
      %557 = vmatpush.msra.mxu0 %v358
      %558 = vmatmul.f32.gmra.mxu0 %v540
      %v559 = vpop.f32.mrf.mxu0
      %v560 = vadd.f32 %v391, %v559
      %561 = vdwg.mxu0
      %s562 = scalar_lea.vmem %s287, 24
      %563 = vst [vmem:[%s562] sm:$0xff] %v560
      %564 = vst.msk [vmem:[#allocation2] sm:$0xff] %vm349, %v538
      %s565 = smul.u32 %s21, 2
      %s566 = sadd.s32 %s565, %s22
      %s567 = smul.u32 4, %s566
      %p568 = scmp.lt.s32.totalorder %s567, 7
      %s569 = scalar_select %p568, %s567, 7
      %s570 = smul.addr %s569, 8
      %s571 = scalar_lea.vmem %s6, %s570
      // Predicated region
      $region49: #{rnn_cell_tagger_forward.1} parent=43 // pred_check
        %p572 = pneg %p186
      $region50: #{rnn_cell_tagger_forward.1} parent=43 // pred_check_branch
        %574 = sbr.rel (%p572) target = $region52
      $region51: #{rnn_cell_tagger_forward.1} parent=43 // pred_region
        %s575 = smul.u32 %s21, 2
        %s576 = sadd.s32 %s575, %s22
        %s577 = smul.u32 4, %s576
      $region52: #{rnn_cell_tagger_forward.1} parent=43 // pred_fallthru
        _
    $region44: #{rnn_cell_tagger_forward.1} parent=5 // pred_fallthru
      _
    %p578 = scmp.le.s32.totalorder 2, %s12
    // Predicated region
    $region53: #{rnn_cell_tagger_forward.1} parent=5 // pred_check
      %p579 = pneg %p578
    $region54: #{rnn_cell_tagger_forward.1} parent=5 // pred_check_branch
      %581 = sbr.rel (%p579) target = $region56
    $region55: #{rnn_cell_tagger_forward.1} parent=5 // pred_region
      %s582 = ssub.s32 %s12, 2
      // Predicated region
      $region57: #{rnn_cell_tagger_forward.1} parent=55 // pred_check
        %p583 = pneg %p192
      $region58: #{rnn_cell_tagger_forward.1} parent=55 // pred_check_branch
        %585 = sbr.rel (%p583) target = $region60
      $region59: #{rnn_cell_tagger_forward.1} parent=55 // pred_region
        %s586 = smul.u32 %s23, 2
        %s587 = sadd.s32 %s586, %s24
        %s588 = smul.u32 4, %s587
        %p589 = scmp.lt.s32.totalorder %s588, 7
        %s590 = scalar_select %p589, %s588, 7
        %s591 = smul.addr %s590, 8
        %s592 = scalar_lea.vmem %s6, %s591
      $region60: #{rnn_cell_tagger_forward.1} parent=55 // pred_fallthru
        _
    $region56: #{rnn_cell_tagger_forward.1} parent=5 // pred_fallthru
      _
  $region6: #{rnn_cell_tagger_forward.1} parent=0 // loop_footer
    %s16 = sadd.s32 1, %s12
  $region7: #{rnn_cell_tagger_forward.1} parent=0 // loop_footer_branch
    %11 = sbr.rel target = $region3
  $region8: #{rnn_cell_tagger_forward.1} parent=0 // loop_exit
    _

</llo_original>
